<compile_context>
chip_gen: v5e
topology: v5e:2x2
jax: 0.10.0
libtpu: 0.0.40
codegen_flags: <defaults>
</compile_context>

<pallas_src>
import jax
import jax.numpy as jnp
from jax.experimental import pallas as pl
from jax.experimental.pallas import tpu as pltpu


def _round_up(x, m):
    return (x + m - 1) // m * m


def _net_kernel(x_ref, w1_ref, b1_ref, w2_ref, b2_ref, o_ref):
    # fc1: [TB, S](bf16) @ [S, Hp](bf16) -> f32, bias add + ReLU in f32.
    h = jnp.dot(x_ref[...], w1_ref[...], preferred_element_type=jnp.float32)
    h = jnp.maximum(h + b1_ref[...], 0.0)
    # fc2: [TB, Hp](bf16) @ [Hp, Ap](bf16) -> f32, bias add in f32.
    out = jnp.dot(h.astype(jnp.bfloat16), w2_ref[...],
                  preferred_element_type=jnp.float32)
    o_ref[...] = (out + b2_ref[...]).astype(o_ref.dtype)


def net_forward(x, w1, b1, w2, b2, *, block_batch=512):
    """MLP forward pass as a single batch-gridded Pallas kernel.

    x : [B, n_states] float32
    w1: [n_states, n_hidden], b1: [n_hidden]
    w2: [n_hidden, n_actions], b2: [n_actions]
    Returns [B, n_actions] float32.
    """
    B, S = x.shape
    H = w1.shape[1]
    A = w2.shape[1]

    # Lane-dense padded dims (multiples of 128 on the lane axis).
    H_pad = _round_up(H, 128)
    A_pad = _round_up(A, 128)

    # Batch tile: multiple of 16 (bf16 sublane packing); pad batch to a multiple.
    tb = min(block_batch, _round_up(B, 16))
    B_pad = _round_up(B, tb)

    # Zero-padded, bf16-cast operands (padded cols/rows are exactly zero, so
    # ReLU and the final slice are unaffected). Biases stay f32.
    x_p = jnp.zeros((B_pad, S), jnp.bfloat16).at[:B, :].set(x.astype(jnp.bfloat16))
    w1_p = jnp.zeros((S, H_pad), jnp.bfloat16).at[:, :H].set(w1.astype(jnp.bfloat16))
    b1_p = jnp.zeros((1, H_pad), jnp.float32).at[:, :H].set(b1.reshape(1, H))
    w2_p = jnp.zeros((H_pad, A_pad), jnp.bfloat16).at[:H, :A].set(w2.astype(jnp.bfloat16))
    b2_p = jnp.zeros((1, A_pad), jnp.float32).at[:, :A].set(b2.reshape(1, A))

    grid = (B_pad // tb,)

    out_padded = pl.pallas_call(
        _net_kernel,
        out_shape=jax.ShapeDtypeStruct((B_pad, A_pad), jnp.float32),
        grid=grid,
        in_specs=[
            pl.BlockSpec((tb, S), lambda i: (i, 0)),        # x tile (streams over batch)
            pl.BlockSpec((S, H_pad), lambda i: (0, 0)),     # w1 (resident)
            pl.BlockSpec((1, H_pad), lambda i: (0, 0)),     # b1 (resident)
            pl.BlockSpec((H_pad, A_pad), lambda i: (0, 0)), # w2 (resident)
            pl.BlockSpec((1, A_pad), lambda i: (0, 0)),     # b2 (resident)
        ],
        out_specs=pl.BlockSpec((tb, A_pad), lambda i: (i, 0)),
        compiler_params=pltpu.CompilerParams(
            # Batch axis is embarrassingly parallel -> megacore sharding on v7x.
            dimension_semantics=("parallel",),
            # Tiles are < 1 MiB even double-buffered; 32 MiB fits every
            # generation's budget (v7x has 64 MiB total VMEM per TC).
            vmem_limit_bytes=32 * 1024 * 1024,
        ),
    )(x_p, w1_p, b1_p, w2_p, b2_p)

    # Slice off batch and lane padding.
    return out_padded[:B, :A]


def init_params(key, n_states, n_hidden, n_actions):
    """Deterministic synthetic parameter init (PyTorch-like uniform fan-in)."""
    k1, k2, k3, k4 = jax.random.split(key, 4)
    bound1 = 1.0 / jnp.sqrt(n_states)
    bound2 = 1.0 / jnp.sqrt(n_hidden)
    w1 = jax.random.uniform(k1, (n_states, n_hidden), jnp.float32, -bound1, bound1)
    b1 = jax.random.uniform(k2, (n_hidden,), jnp.float32, -bound1, bound1)
    w2 = jax.random.uniform(k3, (n_hidden, n_actions), jnp.float32, -bound2, bound2)
    b2 = jax.random.uniform(k4, (n_actions,), jnp.float32, -bound2, bound2)
    return w1, b1, w2, b2


def reference_forward(x, w1, b1, w2, b2):
    """Pure-JAX reference with the same bf16-input / f32-accumulate recipe."""
    xb = x.astype(jnp.bfloat16)
    w1b = w1.astype(jnp.bfloat16)
    w2b = w2.astype(jnp.bfloat16)
    h = jnp.dot(xb, w1b, preferred_element_type=jnp.float32) + b1.reshape(1, -1)
    h = jnp.maximum(h, 0.0)
    out = jnp.dot(h.astype(jnp.bfloat16), w2b, preferred_element_type=jnp.float32)
    return out + b2.reshape(1, -1)


if __name__ == "__main__":
    # Small shapes consistent with a DQN head: n_states=4, n_hidden=32, n_actions=2.
    batch, n_states, n_hidden, n_actions = 8, 4, 32, 2

    key = jax.random.PRNGKey(0)
    kx, kp = jax.random.split(key)
    x = jax.random.normal(kx, (batch, n_states), jnp.float32)
    w1, b1, w2, b2 = init_params(kp, n_states, n_hidden, n_actions)

    out = net_forward(x, w1, b1, w2, b2)
    jax.block_until_ready(out)

    ref = reference_forward(x, w1, b1, w2, b2)
    assert out.shape == (batch, n_actions)
    assert jnp.allclose(out, ref, atol=1e-3, rtol=1e-3), (out, ref)

    # Loose check against the full-f32 math (bf16 weight/activation rounding only).
    ref_f32 = jnp.maximum(x @ w1 + b1.reshape(1, -1), 0.0) @ w2 + b2.reshape(1, -1)
    assert jnp.allclose(out, ref_f32, atol=5e-2, rtol=5e-2)

    print("KERNEL_OK")
</pallas_src>

<mosaic_0001>
module attributes {stable_mosaic.version = 11 : i64} {
  func.func @_net_kernel(%arg0: i32, %arg1: memref<16x4xbf16, #tpu.memory_space<vmem>>, %arg2: memref<4x128xbf16, #tpu.memory_space<vmem>>, %arg3: memref<1x128xf32, #tpu.memory_space<vmem>>, %arg4: memref<128x128xbf16, #tpu.memory_space<vmem>>, %arg5: memref<1x128xf32, #tpu.memory_space<vmem>>, %arg6: memref<16x128xf32, #tpu.memory_space<vmem>>) attributes {dimension_semantics = [#tpu.dimension_semantics<parallel>], iteration_bounds = array<i64: 1>, scalar_prefetch = 0 : i64, scratch_operands = 0 : i64, tpu.core_type = #tpu.core_type<tc>, window_params = [{transform_indices = @transform_0, window_bounds = array<i64: 16, 4>}, {pipeline_mode = #tpu.pipeline_mode<synchronous>, transform_indices = @transform_1, window_bounds = array<i64: 4, 128>}, {pipeline_mode = #tpu.pipeline_mode<synchronous>, transform_indices = @transform_2, window_bounds = array<i64: 1, 128>}, {pipeline_mode = #tpu.pipeline_mode<synchronous>, transform_indices = @transform_3, window_bounds = array<i64: 128, 128>}, {pipeline_mode = #tpu.pipeline_mode<synchronous>, transform_indices = @transform_4, window_bounds = array<i64: 1, 128>}, {transform_indices = @transform_5, window_bounds = array<i64: 16, 128>}]} {
    %c0 = arith.constant 0 : index
    %c0_0 = arith.constant 0 : index
    %0 = vector.load %arg1[%c0, %c0_0] : memref<16x4xbf16, #tpu.memory_space<vmem>>, vector<16x4xbf16>
    %c0_1 = arith.constant 0 : index
    %c0_2 = arith.constant 0 : index
    %1 = vector.load %arg2[%c0_1, %c0_2] : memref<4x128xbf16, #tpu.memory_space<vmem>>, vector<4x128xbf16>
    %cst = arith.constant dense<0.000000e+00> : vector<16x128xf32>
    %2 = tpu.matmul %0, %1, %cst {dimension_numbers = #tpu.dot_dimension_numbers<[1], [0], [0], [1], [0, 0, 1, 1], [], []>} : vector<16x4xbf16>, vector<4x128xbf16>, vector<16x128xf32> -> vector<16x128xf32>
    %c0_3 = arith.constant 0 : index
    %c0_4 = arith.constant 0 : index
    %3 = vector.load %arg3[%c0_3, %c0_4] : memref<1x128xf32, #tpu.memory_space<vmem>>, vector<1x128xf32>
    %4 = vector.broadcast %3 : vector<1x128xf32> to vector<16x128xf32>
    %5 = arith.addf %2, %4 : vector<16x128xf32>
    %cst_5 = arith.constant 0.000000e+00 : f32
    %6 = vector.broadcast %cst_5 : f32 to vector<16x128xf32>
    %7 = arith.maximumf %5, %6 : vector<16x128xf32>
    %8 = arith.truncf %7 : vector<16x128xf32> to vector<16x128xbf16>
    %c0_6 = arith.constant 0 : index
    %c0_7 = arith.constant 0 : index
    %9 = vector.load %arg4[%c0_6, %c0_7] : memref<128x128xbf16, #tpu.memory_space<vmem>>, vector<128x128xbf16>
    %cst_8 = arith.constant dense<0.000000e+00> : vector<16x128xf32>
    %10 = tpu.matmul %8, %9, %cst_8 {dimension_numbers = #tpu.dot_dimension_numbers<[1], [0], [0], [1], [0, 0, 1, 1], [], []>} : vector<16x128xbf16>, vector<128x128xbf16>, vector<16x128xf32> -> vector<16x128xf32>
    %c0_9 = arith.constant 0 : index
    %c0_10 = arith.constant 0 : index
    %11 = vector.load %arg5[%c0_9, %c0_10] : memref<1x128xf32, #tpu.memory_space<vmem>>, vector<1x128xf32>
    %12 = vector.broadcast %11 : vector<1x128xf32> to vector<16x128xf32>
    %13 = arith.addf %10, %12 : vector<16x128xf32>
    %c0_11 = arith.constant 0 : index
    %c0_12 = arith.constant 0 : index
    %14 = vector.load %arg6[%c0_11, %c0_12] : memref<16x128xf32, #tpu.memory_space<vmem>>, vector<16x128xf32>
    tpu.vector_store %arg6[%c0_11, %c0_12], %13 {strides = array<i32>} : memref<16x128xf32, #tpu.memory_space<vmem>>, vector<16x128xf32>,
    return
  }
  func.func @transform_0(%arg0: i32) -> (i32, i32) {
    %c0_i32 = arith.constant 0 : i32
    %c0_i32_0 = arith.constant 0 : i32
    return %arg0, %c0_i32 : i32, i32
  }
  func.func @transform_1(%arg0: i32) -> (i32, i32) {
    %c0_i32 = arith.constant 0 : i32
    %c0_i32_0 = arith.constant 0 : i32
    %c0_i32_1 = arith.constant 0 : i32
    return %c0_i32, %c0_i32_0 : i32, i32
  }
  func.func @transform_2(%arg0: i32) -> (i32, i32) {
    %c0_i32 = arith.constant 0 : i32
    %c0_i32_0 = arith.constant 0 : i32
    %c0_i32_1 = arith.constant 0 : i32
    return %c0_i32, %c0_i32_0 : i32, i32
  }
  func.func @transform_3(%arg0: i32) -> (i32, i32) {
    %c0_i32 = arith.constant 0 : i32
    %c0_i32_0 = arith.constant 0 : i32
    %c0_i32_1 = arith.constant 0 : i32
    return %c0_i32, %c0_i32_0 : i32, i32
  }
  func.func @transform_4(%arg0: i32) -> (i32, i32) {
    %c0_i32 = arith.constant 0 : i32
    %c0_i32_0 = arith.constant 0 : i32
    %c0_i32_1 = arith.constant 0 : i32
    return %c0_i32, %c0_i32_0 : i32, i32
  }
  func.func @transform_5(%arg0: i32) -> (i32, i32) {
    %c0_i32 = arith.constant 0 : i32
    %c0_i32_0 = arith.constant 0 : i32
    return %arg0, %c0_i32 : i32, i32
  }
}

</mosaic_0001>

<llo_original>
// kernel: tpu_custom_call.1
$region0: #{tpu_custom_call.1}
  #allocation0 [shape = 'u32[]', space=smem, size = 0x4, offset = 0x4, fixed_abs, tag = 'smem constant byte address 0x4 - core index']
  #allocation1 [shape = 'u32[72,128]{1,0:T(1,128)}', space=vmem, size = 0x9000, scoped, tag = 'internal scratch']
  %s0 = inlined_call_operand.vmem [shape: bf16[16,4], index: 0, kind: input, shape index: {}]
  %s1 = inlined_call_operand.vmem [shape: bf16[4,128], index: 1, kind: input, shape index: {}]
  %s2 = inlined_call_operand.vmem [shape: f32[1,128], index: 2, kind: input, shape index: {}]
  %s3 = inlined_call_operand.hbm [shape: bf16[128,128], index: 3, kind: input, shape index: {}]
  %s4 = inlined_call_operand.vmem [shape: f32[1,128], index: 4, kind: input, shape index: {}]
  %s5 = inlined_call_operand.hbm [shape: f32[16,128], index: 5, kind: output, shape index: {}]
  %s6 = sld [smem:[#allocation0]]
  $region34: #{tpu_custom_call.1} parent=0
    _
  %s8 = ssub.s32 1, %s6
  %s9 = scalar_select 0, %s8, %s6
  $region1: #{tpu_custom_call.1} parent=0
    #allocation2 [shape = 'u8[32768]{0}', space=vmem, size = 0x8000, scoped, tag = 'input window, operand 3, single buffered']
    #allocation3 [shape = 's32[1]{0}', space=sflag, size = 0x4, scoped, tag = 'scoped memory for tpu_custom_call.1']
    #allocation4 [shape = 's32[1]{0}', space=sflag, size = 0x4, scoped, tag = 'scoped memory for tpu_custom_call.1']
    #allocation5 [shape = 'u8[8192]{0}', space=vmem, size = 0x2000, scoped, tag = 'output window, operand 0, single buffered']
    %10 = vsyncpa [#allocation3], 0
    %11 = vsyncpa [#allocation4], 0
    // Predicated region
    $region2: #{tpu_custom_call.1} parent=1 // pred_check
      _
    $region3: #{tpu_custom_call.1} parent=1 // pred_check_branch
      %13 = sbr.rel (0) target = $region5
    $region4: #{tpu_custom_call.1} parent=1 // pred_region
      _
    $region5: #{tpu_custom_call.1} parent=1 // pred_fallthru
      _
    // Predicated region
    $region6: #{tpu_custom_call.1} parent=1 // pred_check
      _
    $region7: #{tpu_custom_call.1} parent=1 // pred_check_branch
      %15 = sbr.rel (0) target = $region9
    $region8: #{tpu_custom_call.1} parent=1 // pred_region
      _
    $region9: #{tpu_custom_call.1} parent=1 // pred_fallthru
      _
    // Predicated region
    $region10: #{tpu_custom_call.1} parent=1 // pred_check
      _
    $region11: #{tpu_custom_call.1} parent=1 // pred_check_branch
      %17 = sbr.rel (0) target = $region13
    $region12: #{tpu_custom_call.1} parent=1 // pred_region
      _
    $region13: #{tpu_custom_call.1} parent=1 // pred_fallthru
      _
    // Predicated region
    $region14: #{tpu_custom_call.1} parent=1 // pred_check
      _
    $region15: #{tpu_custom_call.1} parent=1 // pred_check_branch
      %19 = sbr.rel (0) target = $region17
    $region16: #{tpu_custom_call.1} parent=1 // pred_region
      %21 = vsyncadd [#allocation3], 0
      %s22 = sshll.u32 %s3, 4
      %s23 = int_to_ptr.hbm [resolvable:$true] %s22
      %s24 = sshll.u32 [#allocation2], 4
      %s25 = int_to_ptr.vmem [resolvable:$true] %s24
      %30 = dma.hbm_to_vmem [thread:$0]  %s23, 1024, %s25, [#allocation3], 64, 64, 4
    $region17: #{tpu_custom_call.1} parent=1 // pred_fallthru
      _
    // Predicated region
    $region18: #{tpu_custom_call.1} parent=1 // pred_check
      _
    $region19: #{tpu_custom_call.1} parent=1 // pred_check_branch
      %32 = sbr.rel (0) target = $region21
    $region20: #{tpu_custom_call.1} parent=1 // pred_region
      _
    $region21: #{tpu_custom_call.1} parent=1 // pred_fallthru
      _
    // Predicated region
    $region22: #{tpu_custom_call.1} parent=1 // pred_check
      _
    $region23: #{tpu_custom_call.1} parent=1 // pred_check_branch
      %34 = sbr.rel (0) target = $region25
    $region24: #{tpu_custom_call.1} parent=1 // pred_region
      %36 = dma.done [#allocation3], 1024
    $region25: #{tpu_custom_call.1} parent=1 // pred_fallthru
      _
    %v38 = vld [vmem:[%s0] sm:$0xf]
    %v39 = vld [vmem:[%s0 + $0x4] sm:$0xf]
    %v40 = vld [vmem:[%s1] sm:$0x3]
    %v41 = vld [vmem:[%s2] sm:$0x1]
    %v43 = vperm.slane %v41, 0
    %v47 = vunpack.c.l.b16 %v38
    %v48 = vunpack.c.l.b16 %v39
    %v49 = vpack.c.b16 %v48, %v47
    %vm50 = vcmask 31744
    %v52 = vsel %vm50, %v49, 0
    %vm54 = vcmask 1041408
    %v56 = vsel %vm54, %v40, 0
    %58 = vmatpush.bf16.msra.mxu0 0
    %59 = vmatpush.bf16.msra.mxu0 0
    %60 = vmatpush.bf16.msra.mxu0 0
    %61 = vmatpush.bf16.msra.mxu0 0
    %62 = vmatpush.bf16.msra.mxu0 0
    %63 = vmatpush.bf16.msra.mxu0 0
    %64 = vmatpush.bf16.msra.mxu0 0
    %65 = vmatpush.bf16.msra.mxu0 %v56
    %66 = vmatmul.bf16.gmra.mxu0 %v52
    %v67 = vpop.f32.mrf.mxu0
    %v68 = vadd.f32 %v43, %v67
    %v69 = vpop.f32.mrf.mxu0
    %v70 = vadd.f32 %v43, %v69
    %71 = vdwg.mxu0
    %v72 = vmax.f32 %v68, 0.0
    %v73 = vmax.f32 %v70, 0.0
    %v74 = vpack.c.bf16 %v73, %v72
    %v75 = vld [vmem:[#allocation2] sm:$0xf]
    %v76 = vld [vmem:[#allocation2 + $0x4] sm:$0xf]
    %v77 = vld [vmem:[#allocation2 + $0x8] sm:$0xf]
    %v78 = vld [vmem:[#allocation2 + $0xc] sm:$0xf]
    %v79 = vld [vmem:[#allocation2 + $0x10] sm:$0xf]
    %v80 = vld [vmem:[#allocation2 + $0x14] sm:$0xf]
    %v81 = vld [vmem:[#allocation2 + $0x18] sm:$0xf]
    %v82 = vld [vmem:[#allocation2 + $0x1c] sm:$0xf]
    %v83 = vld [vmem:[#allocation2 + $0x20] sm:$0xf]
    %v84 = vld [vmem:[#allocation2 + $0x24] sm:$0xf]
    %v85 = vld [vmem:[#allocation2 + $0x28] sm:$0xf]
    %v86 = vld [vmem:[#allocation2 + $0x2c] sm:$0xf]
    %v87 = vld [vmem:[#allocation2 + $0x30] sm:$0xf]
    %v88 = vld [vmem:[#allocation2 + $0x34] sm:$0xf]
    %v89 = vld [vmem:[#allocation2 + $0x38] sm:$0xf]
    %v90 = vld [vmem:[#allocation2 + $0x3c] sm:$0xf]
    %v91 = vld [vmem:[%s4] sm:$0x1]
    %v93 = vperm.slane %v91, 0
    %v111 = vunpack.c.l.b16 %v75
    %v112 = vunpack.c.l.b16 %v76
    %v113 = vunpack.c.l.b16 %v77
    %v114 = vunpack.c.l.b16 %v78
    %v115 = vunpack.c.l.b16 %v79
    %v116 = vunpack.c.l.b16 %v80
    %v117 = vunpack.c.l.b16 %v81
    %v118 = vunpack.c.l.b16 %v82
    %v119 = vunpack.c.l.b16 %v83
    %v120 = vunpack.c.l.b16 %v84
    %v121 = vunpack.c.l.b16 %v85
    %v122 = vunpack.c.l.b16 %v86
    %v123 = vunpack.c.l.b16 %v87
    %v124 = vunpack.c.l.b16 %v88
    %v125 = vunpack.c.l.b16 %v89
    %v126 = vunpack.c.l.b16 %v90
    %v127 = vpack.c.b16 %v112, %v111
    %v128 = vpack.c.b16 %v114, %v113
    %v129 = vpack.c.b16 %v116, %v115
    %v130 = vpack.c.b16 %v118, %v117
    %v131 = vpack.c.b16 %v120, %v119
    %v132 = vpack.c.b16 %v122, %v121
    %v133 = vpack.c.b16 %v124, %v123
    %v134 = vpack.c.b16 %v126, %v125
    %143 = vmatpush.bf16.msra.mxu0 %v134
    %144 = vmatpush.bf16.msra.mxu0 %v133
    %145 = vmatpush.bf16.msra.mxu0 %v132
    %146 = vmatpush.bf16.msra.mxu0 %v131
    %147 = vmatpush.bf16.msra.mxu0 %v130
    %148 = vmatpush.bf16.msra.mxu0 %v129
    %149 = vmatpush.bf16.msra.mxu0 %v128
    %150 = vmatpush.bf16.msra.mxu0 %v127
    %151 = vmatmul.bf16.gmra.mxu0 %v74
    %v152 = vpop.f32.mrf.mxu0
    %v153 = vadd.f32 %v93, %v152
    %v154 = vpop.f32.mrf.mxu0
    %v155 = vadd.f32 %v93, %v154
    %156 = vdwg.mxu0
    %157 = vst [vmem:[#allocation5] sm:$0xff] %v153
    %158 = vst [vmem:[#allocation5 + $0x8] sm:$0xff] %v155
    // Predicated region
    $region26: #{tpu_custom_call.1} parent=1 // pred_check
      _
    $region27: #{tpu_custom_call.1} parent=1 // pred_check_branch
      %160 = sbr.rel (0) target = $region29
    $region28: #{tpu_custom_call.1} parent=1 // pred_region
      %162 = vsyncadd [#allocation4], 0
      %s163 = sshll.u32 [#allocation5], 4
      %s164 = int_to_ptr.vmem [resolvable:$true] %s163
      %s165 = sshll.u32 %s5, 4
      %s166 = int_to_ptr.hbm [resolvable:$true] %s165
      %171 = dma.vmem_to_hbm [thread:$0]  %s164, 256, %s166, [#allocation4], 128, 128, 8
    $region29: #{tpu_custom_call.1} parent=1 // pred_fallthru
      _
    // Predicated region
    $region30: #{tpu_custom_call.1} parent=1 // pred_check
      _
    $region31: #{tpu_custom_call.1} parent=1 // pred_check_branch
      %173 = sbr.rel (0) target = $region33
    $region32: #{tpu_custom_call.1} parent=1 // pred_region
      %175 = dma.done [#allocation4], 256
    $region33: #{tpu_custom_call.1} parent=1 // pred_fallthru
      _
    %176 = vsyncpa [#allocation3], 1
    %177 = vsyncpa [#allocation4], 1

</llo_original>
